<compile_context>
chip_gen: v7x
topology: tpu7x:2x2x1
jax: 0.10.0
libtpu: 0.0.40
codegen_flags: <defaults>
</compile_context>

<pallas_src>
import jax
import jax.numpy as jnp
from jax.experimental import pallas as pl
from jax.experimental.pallas import tpu as pltpu

_LANE_CANDIDATES = (1024, 512, 256, 128)   # widest lane-dense slab that divides n
_TARGET_BLOCK_BYTES = 1 << 20              # ~1 MiB per block


def _relu_kernel(x_ref, y_ref):
    # Primal: ReLU(x) = max(x, 0)   (pure VPU, mem-bound)
    y_ref[...] = jnp.maximum(x_ref[...], jnp.zeros((), x_ref.dtype))


def _heaviside_kernel(xd_ref, yd_ref):
    # Derivative path exactly as written in the AutoMAD source: Heaviside(xd).
    one = jnp.ones((), yd_ref.dtype)
    zero = jnp.zeros((), yd_ref.dtype)
    yd_ref[...] = jnp.where(xd_ref[...] > 0, one, zero)


def _slab_layout(n):
    """Pick the widest lane dim dividing n; fall back to 128 + pad (rare)."""
    for lanes in _LANE_CANDIDATES:
        if n % lanes == 0:
            return lanes, 0
    lanes = 128
    pad = (-n) % lanes
    return lanes, pad


def _choose_block_rows(rows, lanes, itemsize):
    """~1 MiB blocks; multiple of 8 when tiled, or full extent if small."""
    target = max(8, _TARGET_BLOCK_BYTES // (lanes * itemsize))
    if rows <= target:
        return rows                 # single full-extent block (legal even if rows % 8 != 0)
    return max(8, (target // 8) * 8)


def _tiled_elementwise(kernel, a):
    """Run an elementwise Pallas kernel over `a` as a lane-dense tiled slab."""
    n = a.size
    lanes, pad = _slab_layout(n)
    flat = a.reshape(-1)
    if pad:
        # Fallback only; never taken for element counts that are multiples of 128.
        flat = jnp.pad(flat, (0, pad))
    rows = flat.shape[0] // lanes
    slab = flat.reshape(rows, lanes)

    block_rows = _choose_block_rows(rows, lanes, a.dtype.itemsize)
    grid = (pl.cdiv(rows, block_rows),)

    out_slab = pl.pallas_call(
        kernel,
        grid=grid,
        out_shape=jax.ShapeDtypeStruct(slab.shape, a.dtype),
        in_specs=[pl.BlockSpec((block_rows, lanes), lambda i: (i, 0))],
        out_specs=pl.BlockSpec((block_rows, lanes), lambda i: (i, 0)),
        compiler_params=pltpu.CompilerParams(
            dimension_semantics=("parallel",),
        ),
    )(slab)

    if pad:
        return out_slab.reshape(-1)[:n].reshape(a.shape)
    return out_slab.reshape(a.shape)


def relu_automad(x, xd, n_dervs_incoming):
    """Forward pass of AutoMAD ReLU.

    Returns (ret, ret_d, grad_vec) mirroring DualTensor(zeros(n), ret, ret_d).
    """
    ret = _tiled_elementwise(_relu_kernel, x)
    # yd kept in f32 to honor the DualTensor contract (could be bf16/int8 if
    # downstream consumers tolerated a dtype change).
    ret_d = _tiled_elementwise(_heaviside_kernel, xd)
    # DualTensor bookkeeping vector (no compute; forward pass fills it with 0s).
    grad_vec = jnp.zeros((n_dervs_incoming,), jnp.float32)
    return ret, ret_d, grad_vec


if __name__ == "__main__":
    key = jax.random.PRNGKey(0)
    k1, k2 = jax.random.split(key)

    # Small shapes consistent with the module's conventions (NCHW primal,
    # derivatives stacked along channels: C * n_dervs).
    N, C, H, W = 2, 4, 16, 16
    n_dervs = 3

    x = jax.random.normal(k1, (N, C, H, W), dtype=jnp.float32)
    xd = jax.random.normal(k2, (N, C * n_dervs, H, W), dtype=jnp.float32)

    ret, ret_d, grad_vec = relu_automad(x, xd, n_dervs_incoming=n_dervs)
    jax.block_until_ready((ret, ret_d, grad_vec))

    # Reference check against plain JAX (same semantics as the torch code).
    assert ret.shape == x.shape and ret_d.shape == xd.shape
    assert jnp.allclose(ret, jnp.maximum(x, 0.0))
    assert jnp.allclose(ret_d, jnp.where(xd > 0, 1.0, 0.0))
    assert bool(jnp.all(grad_vec == 0.0))

    # TODO(synk): the torch forward also print()s min/max of the dual tensor;
    # that is debug I/O, not compute, and is intentionally omitted.
    print("KERNEL_OK")
</pallas_src>

<mosaic_0001>
module attributes {stable_mosaic.version = 11 : i64} {
  func.func @_relu_kernel(%arg0: i32, %arg1: memref<2x1024xf32, #tpu.memory_space<vmem>>, %arg2: memref<2x1024xf32, #tpu.memory_space<vmem>>) attributes {dimension_semantics = [#tpu.dimension_semantics<parallel>], iteration_bounds = array<i64: 1>, scalar_prefetch = 0 : i64, scratch_operands = 0 : i64, tpu.core_type = #tpu.core_type<tc>, window_params = [{transform_indices = @transform_0, window_bounds = array<i64: 2, 1024>}, {transform_indices = @transform_1, window_bounds = array<i64: 2, 1024>}]} {
    %c0 = arith.constant 0 : index
    %c0_0 = arith.constant 0 : index
    %0 = vector.load %arg1[%c0, %c0_0] : memref<2x1024xf32, #tpu.memory_space<vmem>>, vector<2x1024xf32>
    %cst = arith.constant 0.000000e+00 : f32
    %1 = vector.broadcast %cst : f32 to vector<2x1024xf32>
    %2 = arith.maximumf %0, %1 : vector<2x1024xf32>
    %c0_1 = arith.constant 0 : index
    %c0_2 = arith.constant 0 : index
    %3 = vector.load %arg2[%c0_1, %c0_2] : memref<2x1024xf32, #tpu.memory_space<vmem>>, vector<2x1024xf32>
    tpu.vector_store %arg2[%c0_1, %c0_2], %2 {strides = array<i32>} : memref<2x1024xf32, #tpu.memory_space<vmem>>, vector<2x1024xf32>,
    return
  }
  func.func @transform_0(%arg0: i32) -> (i32, i32) {
    %c0_i32 = arith.constant 0 : i32
    %c0_i32_0 = arith.constant 0 : i32
    return %arg0, %c0_i32 : i32, i32
  }
  func.func @transform_1(%arg0: i32) -> (i32, i32) {
    %c0_i32 = arith.constant 0 : i32
    %c0_i32_0 = arith.constant 0 : i32
    return %arg0, %c0_i32 : i32, i32
  }
}

</mosaic_0001>

<llo_original>
// kernel: tpu_custom_call.1
$region0: #{tpu_custom_call.1}
  #allocation0 [shape = 'u32[]', space=smem, size = 0x4, offset = 0x4, fixed_abs, tag = 'smem constant byte address 0x4 - core index']
  #allocation1 [shape = 'u32[144,128]{1,0:T(1,128)}', space=vmem, size = 0x12000, scoped, tag = 'internal scratch']
  %s0 = inlined_call_operand.hbm [shape: f32[2,1024], index: 0, kind: input, shape index: {}]
  %s1 = inlined_call_operand.hbm [shape: f32[2,1024], index: 1, kind: output, shape index: {}]
  %s2 = sld [smem:[#allocation0]]
  $region18: #{tpu_custom_call.1} parent=0
    _
  %s4 = ssub.s32 1, %s2
  %s5 = scalar_select 0, %s4, %s2
  $region1: #{tpu_custom_call.1} parent=0
    #allocation2 [shape = 'u8[8192]{0}', space=vmem, size = 0x2000, scoped, tag = 'input window, operand 0, single buffered']
    #allocation3 [shape = 's32[1]{0}', space=sflag, size = 0x4, scoped, tag = 'scoped memory for tpu_custom_call.1']
    #allocation4 [shape = 's32[1]{0}', space=sflag, size = 0x4, scoped, tag = 'scoped memory for tpu_custom_call.1']
    #allocation5 [shape = 'u8[8192]{0}', space=vmem, size = 0x2000, scoped, tag = 'output window, operand 0, single buffered']
    %6 = vsyncpa [#allocation3], 0
    %7 = vsyncpa [#allocation4], 0
    // Predicated region
    $region2: #{tpu_custom_call.1} parent=1 // pred_check
      _
    $region3: #{tpu_custom_call.1} parent=1 // pred_check_branch
      %9 = sbr.rel (0) target = $region5
    $region4: #{tpu_custom_call.1} parent=1 // pred_region
      %s11 = ssub.s32 256, 256
      %12 = vsyncadd [#allocation3], %s11
      %s14 = sshll.u32 [#allocation2], 4
      %s15 = int_to_ptr.vmem [resolvable:$true] %s14
      %17 = dma.hbm_to_vmem [thread:$0]  %s0, 256, %s15, [#allocation3]
    $region5: #{tpu_custom_call.1} parent=1 // pred_fallthru
      _
    // Predicated region
    $region6: #{tpu_custom_call.1} parent=1 // pred_check
      _
    $region7: #{tpu_custom_call.1} parent=1 // pred_check_branch
      %19 = sbr.rel (0) target = $region9
    $region8: #{tpu_custom_call.1} parent=1 // pred_region
      %20 = dma.done [#allocation3], 256
    $region9: #{tpu_custom_call.1} parent=1 // pred_fallthru
      _
    %v21 = vld [vmem:[#allocation2] sm:$0xff]
    %v22 = vld [vmem:[#allocation2 + $0x8] sm:$0xff]
    %v23 = vmax.f32 %v21, 0.0
    %v24 = vmax.f32 %v22, 0.0
    %25 = vst [vmem:[#allocation5] sm:$0xff] %v23
    %26 = vst [vmem:[#allocation5 + $0x8] sm:$0xff] %v24
    // Predicated region
    $region10: #{tpu_custom_call.1} parent=1 // pred_check
      _
    $region11: #{tpu_custom_call.1} parent=1 // pred_check_branch
      %28 = sbr.rel (0) target = $region13
    $region12: #{tpu_custom_call.1} parent=1 // pred_region
      %s30 = ssub.s32 256, 256
      %31 = vsyncadd [#allocation4], %s30
      %s33 = sshll.u32 [#allocation5], 4
      %s34 = int_to_ptr.vmem [resolvable:$true] %s33
      %36 = dma.vmem_to_hbm [thread:$0]  %s34, 256, %s1, [#allocation4]
    $region13: #{tpu_custom_call.1} parent=1 // pred_fallthru
      _
    // Predicated region
    $region14: #{tpu_custom_call.1} parent=1 // pred_check
      _
    $region15: #{tpu_custom_call.1} parent=1 // pred_check_branch
      %38 = sbr.rel (0) target = $region17
    $region16: #{tpu_custom_call.1} parent=1 // pred_region
      %39 = dma.done [#allocation4], 256
    $region17: #{tpu_custom_call.1} parent=1 // pred_fallthru
      _
    %40 = vsyncpa [#allocation3], 1
    %41 = vsyncpa [#allocation4], 1

</llo_original>
